<compile_context>
chip_gen: v5e
topology: v5e:2x2
jax: 0.10.0
libtpu: 0.0.40
codegen_flags: <defaults>
</compile_context>

<pallas_src>
import functools

import jax
import jax.numpy as jnp
from jax.experimental import pallas as pl
from jax.experimental.pallas import tpu as pltpu

NEG_SLOPE = 0.01   # torch.nn.LeakyReLU default
BN_EPS = 1e-5      # torch.nn.BatchNorm1d default


def _round_up(x, m):
    return ((x + m - 1) // m) * m


def _stage_math(x, w, scale, shift, compute_dtype):
    if compute_dtype is not None:
        x = x.astype(compute_dtype)              # cast in VMEM, not in HBM
    z = jnp.dot(x, w, preferred_element_type=jnp.float32)   # MXU, f32 accumulation
    z = jnp.where(z >= 0, z, NEG_SLOPE * z)      # LeakyReLU (VPU)
    return z * scale + shift                     # eval-mode BN, folded (f32)


def _stage_kernel(x_ref, w_ref, scale_ref, shift_ref, o_ref, *, compute_dtype):
    z = _stage_math(x_ref[...], w_ref[...], scale_ref[...], shift_ref[...], compute_dtype)
    o_ref[...] = z.astype(o_ref.dtype)


def _stage_skip_kernel(x_ref, w_ref, scale_ref, shift_ref, skip_ref, o_ref, *,
                       compute_dtype):
    z = _stage_math(x_ref[...], w_ref[...], scale_ref[...], shift_ref[...], compute_dtype)
    z = z + skip_ref[...].astype(jnp.float32)    # fused skip add (UpBlock: upA + skip)
    o_ref[...] = z.astype(o_ref.dtype)


def upblock_stage(x, weight, bn_gamma, bn_beta, bn_mean, bn_var, *,
                  skip=None, tm=2048, compute_dtype=None, out_dtype=None, eps=BN_EPS):
    """Fused per-voxel UpBlock stage: BN_eval(leaky_relu(x @ weight.T)) [+ skip].

    x:      [N, C_in]      voxel feature matrix
    weight: [C_out, C_in]  torch convention for the conv centre tap
    bn_*:   [C_out]        BatchNorm1d affine params and running stats
    skip:   optional [N, C_out] residual added after BN (fused epilogue)
    """
    n, c_in = x.shape
    c_out = weight.shape[0]
    assert weight.shape == (c_out, c_in)
    if skip is not None:
        assert skip.shape == (n, c_out)
    out_dtype = out_dtype or x.dtype

    # Fold eval-mode BN into per-channel scale/shift, kept in f32.
    inv_std = jax.lax.rsqrt(bn_var.astype(jnp.float32) + jnp.float32(eps))
    scale = bn_gamma.astype(jnp.float32) * inv_std
    shift = bn_beta.astype(jnp.float32) - bn_mean.astype(jnp.float32) * scale

    w_t = weight.T.astype(jnp.float32)           # [C_in, C_out]

    # ---- lane-dense packing: pack 2 voxels per row when C < 128 lanes --------------
    pack = 1
    if (n % 2 == 0 and n >= 2
            and (2 * c_in) % 128 == 0 and (2 * c_out) % 128 == 0
            and not (c_in % 128 == 0 and c_out % 128 == 0)):
        pack = 2

    if pack == 2:
        x_p = x.reshape(n // 2, 2 * c_in)                       # bitcast view (row-major)
        w_p = jnp.kron(jnp.eye(2, dtype=w_t.dtype), w_t)        # blockdiag(Wt, Wt)
        scale_p = jnp.tile(scale.reshape(1, c_out), (1, 2))
        shift_p = jnp.tile(shift.reshape(1, c_out), (1, 2))
        skip_p = None if skip is None else skip.reshape(n // 2, 2 * c_out)
    else:
        x_p, w_p = x, w_t
        scale_p = scale.reshape(1, c_out)
        shift_p = shift.reshape(1, c_out)
        skip_p = skip

    if compute_dtype is not None:
        # Only the (tiny) weight is cast here; x stays in its HBM dtype and is cast
        # inside the kernel, avoiding a standalone wrapper-side cast pass over [N, C].
        w_p = w_p.astype(compute_dtype)

    rows, k = x_p.shape
    cols = c_out * pack

    # Sublane alignment: 16 if any bf16 tile is read/written, else 8.
    align = 16 if (out_dtype == jnp.bfloat16 or x.dtype == jnp.bfloat16) else 8

    # Large row tiles amortize the ~0.35 us/step pipeline overhead, but cap so the
    # parallel grid keeps >= 2 steps (v7x megacore sharding across its 2 TCs).
    tm_eff = max(align, min(tm, _round_up(pl.cdiv(rows, 2), align)))
    grid = (pl.cdiv(rows, tm_eff),)

    in_b = jnp.dtype(x_p.dtype).itemsize
    out_b = jnp.dtype(out_dtype).itemsize
    skip_bytes = 0 if skip_p is None else rows * cols * jnp.dtype(skip_p.dtype).itemsize
    cost = pl.CostEstimate(
        flops=2 * rows * k * cols + 6 * rows * cols,
        transcendentals=0,
        bytes_accessed=(rows * k * in_b                    # read x
                        + k * cols * jnp.dtype(w_p.dtype).itemsize   # read weight
                        + 2 * cols * 4                     # read scale/shift
                        + skip_bytes                       # read fused skip
                        + rows * cols * out_b),            # write y
    )

    in_specs = [
        pl.BlockSpec((tm_eff, k), lambda i: (i, 0)),        # x row tile
        pl.BlockSpec((k, cols), lambda i: (0, 0)),          # full (block-diag) weight
        pl.BlockSpec((1, cols), lambda i: (0, 0)),          # BN scale
        pl.BlockSpec((1, cols), lambda i: (0, 0)),          # BN shift
    ]
    args = [x_p, w_p, scale_p, shift_p]
    if skip_p is not None:
        in_specs.append(pl.BlockSpec((tm_eff, cols), lambda i: (i, 0)))  # same ragged spec as out
        args.append(skip_p)
        kernel = functools.partial(_stage_skip_kernel, compute_dtype=compute_dtype)
    else:
        kernel = functools.partial(_stage_kernel, compute_dtype=compute_dtype)

    out = pl.pallas_call(
        kernel,
        out_shape=jax.ShapeDtypeStruct((rows, cols), out_dtype),
        grid_spec=pltpu.PrefetchScalarGridSpec(
            num_scalar_prefetch=0,
            grid=grid,
            in_specs=in_specs,
            out_specs=pl.BlockSpec((tm_eff, cols), lambda i: (i, 0)),
        ),
        compiler_params=pltpu.CompilerParams(
            # Row axis is embarrassingly parallel -> shards across v7x's 2 TensorCores.
            dimension_semantics=("parallel",),
        ),
        cost_estimate=cost,
    )(*args)

    return out.reshape(n, c_out)


def upblock_forward(x_feats, skip_feats, p_trans, p1, p2, p3, *, compute_dtype=None):
    """Per-voxel dense part of UpBlock.forward on the sparse feature matrices.

    trans_dilao -> LeakyReLU -> trans_bn  (skip add fused into this stage's epilogue),
    then conv1/conv2/conv3 stages, each conv -> LeakyReLU -> bn.
    """
    # TODO(synk): up_subm (SparseInverseConv3d) rulebook gather/scatter is not modeled;
    #             the skip add that follows it in the PyTorch forward is fused here.
    upA = upblock_stage(x_feats, p_trans['w'], p_trans['gamma'], p_trans['beta'],
                        p_trans['mean'], p_trans['var'], skip=skip_feats,
                        compute_dtype=compute_dtype)
    upE = upblock_stage(upA, p1['w'], p1['gamma'], p1['beta'], p1['mean'], p1['var'],
                        compute_dtype=compute_dtype)
    upE = upblock_stage(upE, p2['w'], p2['gamma'], p2['beta'], p2['mean'], p2['var'],
                        compute_dtype=compute_dtype)
    upE = upblock_stage(upE, p3['w'], p3['gamma'], p3['beta'], p3['mean'], p3['var'],
                        compute_dtype=compute_dtype)
    return upE


# --------------------------- pure-JAX reference ------------------------------------
def _reference_stage(x, w, gamma, beta, mean, var, skip=None, eps=BN_EPS):
    z = jnp.dot(x.astype(jnp.float32), w.T.astype(jnp.float32),
                preferred_element_type=jnp.float32,
                precision=jax.lax.Precision.HIGHEST)
    z = jnp.where(z >= 0, z, NEG_SLOPE * z)
    inv_std = jax.lax.rsqrt(var.astype(jnp.float32) + jnp.float32(eps))
    z = (z - mean.astype(jnp.float32)) * inv_std * gamma.astype(jnp.float32) \
        + beta.astype(jnp.float32)
    if skip is not None:
        z = z + skip.astype(jnp.float32)
    return z


def _reference_forward(x, skip, p_trans, p1, p2, p3):
    upA = _reference_stage(x, skip=skip, **p_trans)
    upE = _reference_stage(upA, **p1)
    upE = _reference_stage(upE, **p2)
    upE = _reference_stage(upE, **p3)
    return upE


if __name__ == "__main__":
    key = jax.random.PRNGKey(0)
    keys = jax.random.split(key, 8)

    def mk_stage(k, ci, co):
        kw, km, kv = jax.random.split(k, 3)
        return dict(
            w=0.1 * jax.random.normal(kw, (co, ci), jnp.float32),
            # UpBlock.weight_initialization(): gamma=1, beta=0; running stats as-if
            # trained so the folded scale/shift path is actually exercised.
            gamma=jnp.ones((co,), jnp.float32),
            beta=jnp.zeros((co,), jnp.float32),
            mean=0.1 * jax.random.normal(km, (co,), jnp.float32),
            var=0.5 + jax.random.uniform(kv, (co,), jnp.float32),
        )

    # ---- full UpBlock per-voxel composition (lane-dense packed path, even N) -------
    c_in, c_out = 128, 64
    n = 1024
    x = jax.random.normal(keys[0], (n, c_in), jnp.float32)
    skip = jax.random.normal(keys[1], (n, c_out), jnp.float32)

    p_trans = mk_stage(keys[2], c_in, c_out)
    p1 = mk_stage(keys[3], c_out, c_out)
    p2 = mk_stage(keys[4], c_out, c_out)
    p3 = mk_stage(keys[5], c_out, c_out)

    y = jax.block_until_ready(upblock_forward(x, skip, p_trans, p1, p2, p3))
    ref = _reference_forward(x, skip, p_trans, p1, p2, p3)
    assert y.shape == (n, c_out) and y.dtype == jnp.float32
    assert jnp.allclose(y, ref, rtol=2e-3, atol=2e-3), \
        float(jnp.max(jnp.abs(y - ref)))

    # ---- ragged / odd-N fallback path (pack=1, masked last block) -------------------
    n_odd = 203
    x_odd = jax.random.normal(keys[6], (n_odd, c_out), jnp.float32)
    y_odd = jax.block_until_ready(
        upblock_stage(x_odd, p1['w'], p1['gamma'], p1['beta'], p1['mean'], p1['var']))
    ref_odd = _reference_stage(x_odd, **p1)
    assert y_odd.shape == (n_odd, c_out)
    assert jnp.allclose(y_odd, ref_odd, rtol=2e-3, atol=2e-3), \
        float(jnp.max(jnp.abs(y_odd - ref_odd)))

    # ---- bf16 compute path: weight bf16, x cast in-kernel, f32 output ---------------
    n2 = 1000
    x2 = jax.random.normal(keys[7], (n2, c_out), jnp.float32)
    y2 = jax.block_until_ready(
        upblock_stage(x2, p1['w'], p1['gamma'], p1['beta'], p1['mean'], p1['var'],
                      tm=256, compute_dtype=jnp.bfloat16))
    ref2 = _reference_stage(x2, **p1)
    assert y2.shape == (n2, c_out) and y2.dtype == jnp.float32
    assert jnp.allclose(y2, ref2, rtol=5e-2, atol=5e-2), \
        float(jnp.max(jnp.abs(y2 - ref2)))

    print("KERNEL_OK")
</pallas_src>

<mosaic_0001>
module attributes {stable_mosaic.version = 11 : i64} {
  func.func @_stage_skip_kernel(%arg0: i32, %arg1: memref<256x256xf32, #tpu.memory_space<vmem>>, %arg2: memref<256x128xf32, #tpu.memory_space<vmem>>, %arg3: memref<1x128xf32, #tpu.memory_space<vmem>>, %arg4: memref<1x128xf32, #tpu.memory_space<vmem>>, %arg5: memref<256x128xf32, #tpu.memory_space<vmem>>, %arg6: memref<256x128xf32, #tpu.memory_space<vmem>>) attributes {dimension_semantics = [#tpu.dimension_semantics<parallel>], iteration_bounds = array<i64: 2>, scalar_prefetch = 0 : i64, scratch_operands = 0 : i64, tpu.core_type = #tpu.core_type<tc>, window_params = [{transform_indices = @transform_0, window_bounds = array<i64: 256, 256>}, {pipeline_mode = #tpu.pipeline_mode<synchronous>, transform_indices = @transform_1, window_bounds = array<i64: 256, 128>}, {pipeline_mode = #tpu.pipeline_mode<synchronous>, transform_indices = @transform_2, window_bounds = array<i64: 1, 128>}, {pipeline_mode = #tpu.pipeline_mode<synchronous>, transform_indices = @transform_3, window_bounds = array<i64: 1, 128>}, {transform_indices = @transform_4, window_bounds = array<i64: 256, 128>}, {transform_indices = @transform_5, window_bounds = array<i64: 256, 128>}]} {
    %c0 = arith.constant 0 : index
    %c0_0 = arith.constant 0 : index
    %0 = vector.load %arg1[%c0, %c0_0] : memref<256x256xf32, #tpu.memory_space<vmem>>, vector<256x256xf32>
    %c0_1 = arith.constant 0 : index
    %c0_2 = arith.constant 0 : index
    %1 = vector.load %arg2[%c0_1, %c0_2] : memref<256x128xf32, #tpu.memory_space<vmem>>, vector<256x128xf32>
    %c0_3 = arith.constant 0 : index
    %c0_4 = arith.constant 0 : index
    %2 = vector.load %arg3[%c0_3, %c0_4] : memref<1x128xf32, #tpu.memory_space<vmem>>, vector<1x128xf32>
    %c0_5 = arith.constant 0 : index
    %c0_6 = arith.constant 0 : index
    %3 = vector.load %arg4[%c0_5, %c0_6] : memref<1x128xf32, #tpu.memory_space<vmem>>, vector<1x128xf32>
    %cst = arith.constant dense<0.000000e+00> : vector<256x128xf32>
    %4 = tpu.matmul %0, %1, %cst {dimension_numbers = #tpu.dot_dimension_numbers<[1], [0], [0], [1], [0, 0, 1, 1], [], []>} : vector<256x256xf32>, vector<256x128xf32>, vector<256x128xf32> -> vector<256x128xf32>
    %cst_7 = arith.constant 0.000000e+00 : f32
    %5 = vector.broadcast %cst_7 : f32 to vector<256x128xf32>
    %6 = arith.cmpf oge, %4, %5 : vector<256x128xf32>
    %cst_8 = arith.constant 0.00999999977 : f32
    %7 = vector.broadcast %cst_8 : f32 to vector<256x128xf32>
    %8 = arith.mulf %7, %4 : vector<256x128xf32>
    %9 = arith.select %6, %4, %8 : vector<256x128xi1>, vector<256x128xf32>
    %10 = vector.broadcast %2 : vector<1x128xf32> to vector<256x128xf32>
    %11 = arith.mulf %9, %10 : vector<256x128xf32>
    %12 = vector.broadcast %3 : vector<1x128xf32> to vector<256x128xf32>
    %13 = arith.addf %11, %12 : vector<256x128xf32>
    %c0_9 = arith.constant 0 : index
    %c0_10 = arith.constant 0 : index
    %14 = vector.load %arg5[%c0_9, %c0_10] : memref<256x128xf32, #tpu.memory_space<vmem>>, vector<256x128xf32>
    %15 = arith.addf %13, %14 : vector<256x128xf32>
    %c0_11 = arith.constant 0 : index
    %c0_12 = arith.constant 0 : index
    %16 = vector.load %arg6[%c0_11, %c0_12] : memref<256x128xf32, #tpu.memory_space<vmem>>, vector<256x128xf32>
    tpu.vector_store %arg6[%c0_11, %c0_12], %15 {strides = array<i32>} : memref<256x128xf32, #tpu.memory_space<vmem>>, vector<256x128xf32>,
    return
  }
  func.func @transform_0(%arg0: i32) -> (i32, i32) {
    %c0_i32 = arith.constant 0 : i32
    %c0_i32_0 = arith.constant 0 : i32
    return %arg0, %c0_i32 : i32, i32
  }
  func.func @transform_1(%arg0: i32) -> (i32, i32) {
    %c0_i32 = arith.constant 0 : i32
    %c0_i32_0 = arith.constant 0 : i32
    %c0_i32_1 = arith.constant 0 : i32
    return %c0_i32, %c0_i32_0 : i32, i32
  }
  func.func @transform_2(%arg0: i32) -> (i32, i32) {
    %c0_i32 = arith.constant 0 : i32
    %c0_i32_0 = arith.constant 0 : i32
    %c0_i32_1 = arith.constant 0 : i32
    return %c0_i32, %c0_i32_0 : i32, i32
  }
  func.func @transform_3(%arg0: i32) -> (i32, i32) {
    %c0_i32 = arith.constant 0 : i32
    %c0_i32_0 = arith.constant 0 : i32
    %c0_i32_1 = arith.constant 0 : i32
    return %c0_i32, %c0_i32_0 : i32, i32
  }
  func.func @transform_4(%arg0: i32) -> (i32, i32) {
    %c0_i32 = arith.constant 0 : i32
    %c0_i32_0 = arith.constant 0 : i32
    return %arg0, %c0_i32 : i32, i32
  }
  func.func @transform_5(%arg0: i32) -> (i32, i32) {
    %c0_i32 = arith.constant 0 : i32
    %c0_i32_0 = arith.constant 0 : i32
    return %arg0, %c0_i32 : i32, i32
  }
}

</mosaic_0001>

<llo_original>
// kernel: tpu_custom_call.1
$region0: #{tpu_custom_call.1}
  #allocation0 [shape = 'u32[]', space=smem, size = 0x4, offset = 0x4, fixed_abs, tag = 'smem constant byte address 0x4 - core index']
  #allocation1 [shape = 'u32[72,128]{1,0:T(1,128)}', space=vmem, size = 0x9000, scoped, tag = 'internal scratch']
  %s0 = inlined_call_operand.hbm [shape: f32[512,256], index: 0, kind: input, shape index: {}]
  %s1 = inlined_call_operand.hbm [shape: f32[256,128], index: 1, kind: input, shape index: {}]
  %s2 = inlined_call_operand.vmem [shape: f32[1,128], index: 2, kind: input, shape index: {}]
  %s3 = inlined_call_operand.vmem [shape: f32[1,128], index: 3, kind: input, shape index: {}]
  %s4 = inlined_call_operand.hbm [shape: f32[512,128], index: 4, kind: input, shape index: {}]
  %s5 = inlined_call_operand.hbm [shape: f32[512,128], index: 5, kind: output, shape index: {}]
  %s6 = sld [smem:[#allocation0]]
  $region65: #{tpu_custom_call.1} parent=0
    _
  %s8 = ssub.s32 1, %s6
  %s9 = scalar_select 0, %s8, %s6
  $region1: #{tpu_custom_call.1} parent=0
    #allocation2 [shape = 'u8[524288]{0}', space=vmem, size = 0x80000, scoped, tag = 'input window, operand 0']
    #allocation3 [shape = 's32[2]{0}', space=sflag, size = 0x8, scoped, tag = 'scoped memory for tpu_custom_call.1']
    #allocation4 [shape = 's32[2]{0}', space=sflag, size = 0x8, scoped, tag = 'scoped memory for tpu_custom_call.1']
    #allocation5 [shape = 'u8[131072]{0}', space=vmem, size = 0x20000, scoped, tag = 'input window, operand 1, single buffered']
    #allocation6 [shape = 's32[1]{0}', space=sflag, size = 0x4, scoped, tag = 'scoped memory for tpu_custom_call.1']
    #allocation7 [shape = 'u8[262144]{0}', space=vmem, size = 0x40000, scoped, tag = 'input window, operand 4']
    #allocation8 [shape = 'u8[262144]{0}', space=vmem, size = 0x40000, scoped, tag = 'output window, operand 0']
    %10 = vsyncpa [#allocation3], 0
    %s11 = scalar_lea.sflag [#allocation3], 1
    %12 = vsyncpa %s11, 0
    %13 = vsyncpa [#allocation6], 0
    %14 = vsyncpa [#allocation4], 0
    %s15 = scalar_lea.sflag [#allocation4], 1
    %16 = vsyncpa %s15, 0
    loop: start=0, step=1, limit=4
    $region2: #{tpu_custom_call.1} parent=1 // loop_pre_header
      _
    $region3: #{tpu_custom_call.1} parent=1 // loop_header
      %s18 = sphi 0, %s22
      %p19 = scmp.ge.s32.totalorder %s18, 4
      %s28 = sphi 0, %s30
      %s31 = sphi 0, %s28
      %s32 = sphi 0, %s31
      %s48 = sphi 0, %s32
      %s52 = sphi 0, %s52
      %s54 = sphi 0, %s52
      %s55 = sphi 0, %s54
      %s69 = sphi 0, %s55
      %s73 = sphi 0, %s73
      %s75 = sphi 0, %s73
      %s76 = sphi 0, %s75
      %s90 = sphi 0, %s76
      %s94 = sphi 0, %s94
      %s96 = sphi 0, %s94
      %s97 = sphi 0, %s96
      %s111 = sphi 0, %s97
      %s117 = sphi 0, %s119
      %s120 = sphi 0, %s117
      %s121 = sphi 0, %s120
      %s137 = sphi 0, %s121
      %s143 = sphi 0, %s145
      %s146 = sphi 0, %s143
      %s147 = sphi 0, %s146
      %s163 = sphi 0, %s147
    $region4: #{tpu_custom_call.1} parent=1 // loop_header_branch
      %21 = sbr.rel (%p19) target = $region8
    $region5: #{tpu_custom_call.1} parent=1 // loop_body
      %s23 = ssub.s32 %s18, 1
      %s24 = ssub.s32 %s18, 2
      %s25 = sadd.s32 %s18, 1
      %s26 = ssub.s32 %s18, %s25
      %p27 = scmp.eq.s32.totalorder %s26, 0
      %s29 = sadd.s32 %s28, 1
      %s30 = scalar_select %p27, %s28, %s29
      %p33 = pneg %p27
      %p34 = scmp.eq.s32.totalorder %s18, 1
      %p35 = por %p33, %p34
      %p36 = scmp.ne.s32.totalorder %s28, %s31
      %p37 = scmp.eq.s32.totalorder %s18, 0
      %p38 = por %p36, %p37
      %p39 = scmp.ne.s32.totalorder %s28, %s31
      %p40 = scmp.eq.s32.totalorder %s23, 1
      %p41 = por %p39, %p40
      %p42 = scmp.ne.s32.totalorder %s31, %s32
      %p43 = scmp.eq.s32.totalorder %s23, 0
      %p44 = por %p42, %p43
      %p45 = scmp.ne.s32.totalorder %s31, %s32
      %p46 = scmp.eq.s32.totalorder %s24, 1
      %p47 = por %p45, %p46
      %p49 = scmp.ne.s32.totalorder %s32, %s48
      %p50 = scmp.eq.s32.totalorder %s24, 0
      %p51 = por %p49, %p50
      %s53 = sadd.s32 %s52, 1
      %p56 = scmp.eq.s32.totalorder %s18, 1
      %p57 = scmp.ne.s32.totalorder %s52, %s54
      %p58 = scmp.eq.s32.totalorder %s18, 0
      %p59 = por %p57, %p58
      %p60 = scmp.ne.s32.totalorder %s52, %s54
      %p61 = scmp.eq.s32.totalorder %s23, 1
      %p62 = por %p60, %p61
      %p63 = scmp.ne.s32.totalorder %s54, %s55
      %p64 = scmp.eq.s32.totalorder %s23, 0
      %p65 = por %p63, %p64
      %p66 = scmp.ne.s32.totalorder %s54, %s55
      %p67 = scmp.eq.s32.totalorder %s24, 1
      %p68 = por %p66, %p67
      %p70 = scmp.ne.s32.totalorder %s55, %s69
      %p71 = scmp.eq.s32.totalorder %s24, 0
      %p72 = por %p70, %p71
      %s74 = sadd.s32 %s73, 1
      %p77 = scmp.eq.s32.totalorder %s18, 1
      %p78 = scmp.ne.s32.totalorder %s73, %s75
      %p79 = scmp.eq.s32.totalorder %s18, 0
      %p80 = por %p78, %p79
      %p81 = scmp.ne.s32.totalorder %s73, %s75
      %p82 = scmp.eq.s32.totalorder %s23, 1
      %p83 = por %p81, %p82
      %p84 = scmp.ne.s32.totalorder %s75, %s76
      %p85 = scmp.eq.s32.totalorder %s23, 0
      %p86 = por %p84, %p85
      %p87 = scmp.ne.s32.totalorder %s75, %s76
      %p88 = scmp.eq.s32.totalorder %s24, 1
      %p89 = por %p87, %p88
      %p91 = scmp.ne.s32.totalorder %s76, %s90
      %p92 = scmp.eq.s32.totalorder %s24, 0
      %p93 = por %p91, %p92
      %s95 = sadd.s32 %s94, 1
      %p98 = scmp.eq.s32.totalorder %s18, 1
      %p99 = scmp.ne.s32.totalorder %s94, %s96
      %p100 = scmp.eq.s32.totalorder %s18, 0
      %p101 = por %p99, %p100
      %p102 = scmp.ne.s32.totalorder %s94, %s96
      %p103 = scmp.eq.s32.totalorder %s23, 1
      %p104 = por %p102, %p103
      %p105 = scmp.ne.s32.totalorder %s96, %s97
      %p106 = scmp.eq.s32.totalorder %s23, 0
      %p107 = por %p105, %p106
      %p108 = scmp.ne.s32.totalorder %s96, %s97
      %p109 = scmp.eq.s32.totalorder %s24, 1
      %p110 = por %p108, %p109
      %p112 = scmp.ne.s32.totalorder %s97, %s111
      %p113 = scmp.eq.s32.totalorder %s24, 0
      %p114 = por %p112, %p113
      %s115 = ssub.s32 %s18, %s25
      %p116 = scmp.eq.s32.totalorder %s115, 0
      %s118 = sadd.s32 %s117, 1
      %s119 = scalar_select %p116, %s117, %s118
      %p122 = pneg %p116
      %p123 = scmp.eq.s32.totalorder %s18, 1
      %p124 = por %p122, %p123
      %p125 = scmp.ne.s32.totalorder %s117, %s120
      %p126 = scmp.eq.s32.totalorder %s18, 0
      %p127 = por %p125, %p126
      %p128 = scmp.ne.s32.totalorder %s117, %s120
      %p129 = scmp.eq.s32.totalorder %s23, 1
      %p130 = por %p128, %p129
      %p131 = scmp.ne.s32.totalorder %s120, %s121
      %p132 = scmp.eq.s32.totalorder %s23, 0
      %p133 = por %p131, %p132
      %p134 = scmp.ne.s32.totalorder %s120, %s121
      %p135 = scmp.eq.s32.totalorder %s24, 1
      %p136 = por %p134, %p135
      %p138 = scmp.ne.s32.totalorder %s121, %s137
      %p139 = scmp.eq.s32.totalorder %s24, 0
      %p140 = por %p138, %p139
      %s141 = ssub.s32 %s18, %s25
      %p142 = scmp.eq.s32.totalorder %s141, 0
      %s144 = sadd.s32 %s143, 1
      %s145 = scalar_select %p142, %s143, %s144
      %p148 = pneg %p142
      %p149 = scmp.eq.s32.totalorder %s18, 1
      %p150 = por %p148, %p149
      %p151 = scmp.ne.s32.totalorder %s143, %s146
      %p152 = scmp.eq.s32.totalorder %s18, 0
      %p153 = por %p151, %p152
      %p154 = scmp.ne.s32.totalorder %s143, %s146
      %p155 = scmp.eq.s32.totalorder %s23, 1
      %p156 = por %p154, %p155
      %p157 = scmp.ne.s32.totalorder %s146, %s147
      %p158 = scmp.eq.s32.totalorder %s23, 0
      %p159 = por %p157, %p158
      %p160 = scmp.ne.s32.totalorder %s146, %s147
      %p161 = scmp.eq.s32.totalorder %s24, 1
      %p162 = por %p160, %p161
      %p164 = scmp.ne.s32.totalorder %s147, %s163
      %p165 = scmp.eq.s32.totalorder %s24, 0
      %p166 = por %p164, %p165
      %p167 = scmp.le.s32.totalorder 1, %s18
      %p168 = scmp.lt.s32.totalorder %s18, 3
      %p169 = pnand %p167, %p168
      %p170 = pneg %p169
      // Predicated region
      $region9: #{tpu_custom_call.1} parent=5 // pred_check
        _
      $region10: #{tpu_custom_call.1} parent=5 // pred_check_branch
        %172 = sbr.rel (%p169) target = $region12
      $region11: #{tpu_custom_call.1} parent=5 // pred_region
        %s173 = ssub.s32 %s18, 1
        // Predicated region
        $region13: #{tpu_custom_call.1} parent=11 // pred_check
          %p174 = pneg %p65
        $region14: #{tpu_custom_call.1} parent=11 // pred_check_branch
          %176 = sbr.rel (%p174) target = $region16
        $region15: #{tpu_custom_call.1} parent=11 // pred_region
          %178 = vsyncadd [#allocation6], 0
          %s179 = sshll.u32 %s1, 4
          %s180 = int_to_ptr.hbm [resolvable:$true] %s179
          %s181 = sshll.u32 [#allocation5], 4
          %s182 = int_to_ptr.vmem [resolvable:$true] %s181
          %187 = dma.hbm_to_vmem [thread:$0]  %s180, 4096, %s182, [#allocation6], 128, 128, 8
        $region16: #{tpu_custom_call.1} parent=11 // pred_fallthru
          _
        // Predicated region
        $region17: #{tpu_custom_call.1} parent=11 // pred_check
          %p188 = pneg %p86
        $region18: #{tpu_custom_call.1} parent=11 // pred_check_branch
          %190 = sbr.rel (%p188) target = $region20
        $region19: #{tpu_custom_call.1} parent=11 // pred_region
          _
        $region20: #{tpu_custom_call.1} parent=11 // pred_fallthru
          _
        // Predicated region
        $region21: #{tpu_custom_call.1} parent=11 // pred_check
          %p191 = pneg %p107
        $region22: #{tpu_custom_call.1} parent=11 // pred_check_branch
          %193 = sbr.rel (%p191) target = $region24
        $region23: #{tpu_custom_call.1} parent=11 // pred_region
          _
        $region24: #{tpu_custom_call.1} parent=11 // pred_fallthru
          _
      $region12: #{tpu_custom_call.1} parent=5 // pred_fallthru
        _
      %p194 = scmp.lt.s32.totalorder %s18, 2
      // Predicated region
      $region25: #{tpu_custom_call.1} parent=5 // pred_check
        %p195 = pneg %p194
      $region26: #{tpu_custom_call.1} parent=5 // pred_check_branch
        %197 = sbr.rel (%p195) target = $region28
      $region27: #{tpu_custom_call.1} parent=5 // pred_region
        // Predicated region
        $region29: #{tpu_custom_call.1} parent=27 // pred_check
          %p198 = pneg %p38
        $region30: #{tpu_custom_call.1} parent=27 // pred_check_branch
          %200 = sbr.rel (%p198) target = $region32
        $region31: #{tpu_custom_call.1} parent=27 // pred_region
          %s201 = sand.u32 %s18, 1
          %s202 = scalar_lea.sflag [#allocation3], %s201
          %s203 = sand.u32 %s28, 1
          %s204 = smul.addr %s203, 512
          %s205 = scalar_lea.vmem [#allocation2], %s204
          %s206 = smul.u32 32, %s18
          %208 = vsyncadd %s202, 0
          %s209 = smul.addr %s206, 2
          %s210 = smul.addr %s209, 8
          %s211 = scalar_lea.hbm %s0, %s210
          %s212 = sshll.u32 %s211, 4
          %s213 = int_to_ptr.hbm [resolvable:$true] %s212
          %s214 = sshll.u32 %s205, 4
          %s215 = int_to_ptr.vmem [resolvable:$true] %s214
          %220 = dma.hbm_to_vmem [thread:$0]  %s213, 8192, %s215, %s202, 256, 256, 16
        $region32: #{tpu_custom_call.1} parent=27 // pred_fallthru
          _
        // Predicated region
        $region33: #{tpu_custom_call.1} parent=27 // pred_check
          %p221 = pneg %p127
        $region34: #{tpu_custom_call.1} parent=27 // pred_check_branch
          %223 = sbr.rel (%p221) target = $region36
        $region35: #{tpu_custom_call.1} parent=27 // pred_region
          %s224 = sand.u32 %s18, 1
          %s225 = scalar_lea.sflag [#allocation3], %s224
          %s226 = sand.u32 %s117, 1
          %s227 = smul.addr %s226, 256
          %s228 = scalar_lea.vmem [#allocation7], %s227
          %s229 = smul.u32 32, %s18
          %231 = vsyncadd %s225, 0
          %s232 = smul.addr %s229, 8
          %s233 = scalar_lea.hbm %s4, %s232
          %s234 = sshll.u32 %s233, 4
          %s235 = int_to_ptr.hbm [resolvable:$true] %s234
          %s236 = sshll.u32 %s228, 4
          %s237 = int_to_ptr.vmem [resolvable:$true] %s236
          %242 = dma.hbm_to_vmem [thread:$0]  %s235, 4096, %s237, %s225, 128, 128, 8
        $region36: #{tpu_custom_call.1} parent=27 // pred_fallthru
          _
      $region28: #{tpu_custom_call.1} parent=5 // pred_fallthru
        _
      %p243 = scmp.le.s32.totalorder 1, %s18
      %p244 = scmp.lt.s32.totalorder %s18, 3
      %p245 = pnand %p243, %p244
      %p246 = pneg %p245
      // Predicated region
      $region37: #{tpu_custom_call.1} parent=5 // pred_check
        _
      $region38: #{tpu_custom_call.1} parent=5 // pred_check_branch
        %248 = sbr.rel (%p245) target = $region40
      $region39: #{tpu_custom_call.1} parent=5 // pred_region
        %s249 = ssub.s32 %s18, 1
        %s250 = sand.u32 %s23, 1
        %s251 = scalar_lea.sflag [#allocation3], %s250
        %s252 = sand.u32 %s31, 1
        %s253 = smul.addr %s252, 512
        %s254 = scalar_lea.vmem [#allocation2], %s253
        // Predicated region
        $region41: #{tpu_custom_call.1} parent=39 // pred_check
          %p255 = pneg %p44
        $region42: #{tpu_custom_call.1} parent=39 // pred_check_branch
          %257 = sbr.rel (%p255) target = $region44
        $region43: #{tpu_custom_call.1} parent=39 // pred_region
          %259 = dma.done %s251, 8192
        $region44: #{tpu_custom_call.1} parent=39 // pred_fallthru
          _
        // Predicated region
        $region45: #{tpu_custom_call.1} parent=39 // pred_check
          %p260 = pneg %p65
        $region46: #{tpu_custom_call.1} parent=39 // pred_check_branch
          %262 = sbr.rel (%p260) target = $region48
        $region47: #{tpu_custom_call.1} parent=39 // pred_region
          %264 = dma.done [#allocation6], 4096
        $region48: #{tpu_custom_call.1} parent=39 // pred_fallthru
          _
        %s265 = sand.u32 %s23, 1
        %s266 = scalar_lea.sflag [#allocation3], %s265
        %s267 = sand.u32 %s120, 1
        %s268 = smul.addr %s267, 256
        %s269 = scalar_lea.vmem [#allocation7], %s268
        // Predicated region
        $region49: #{tpu_custom_call.1} parent=39 // pred_check
          %p270 = pneg %p133
        $region50: #{tpu_custom_call.1} parent=39 // pred_check_branch
          %272 = sbr.rel (%p270) target = $region52
        $region51: #{tpu_custom_call.1} parent=39 // pred_region
          %274 = dma.done %s266, 4096
        $region52: #{tpu_custom_call.1} parent=39 // pred_fallthru
          _
        %s275 = sand.u32 %s23, 1
        %s276 = scalar_lea.sflag [#allocation3], %s275
        %s277 = sand.u32 %s31, 1
        %s278 = smul.addr %s277, 512
        %s279 = scalar_lea.vmem [#allocation2], %s278
        %p280 = pneg %p44
        %p281 = pneg %p41
        %p282 = pneg %p65
        %p283 = pneg %p62
        %p284 = pneg %p86
        %p285 = pneg %p83
        %p286 = pneg %p107
        %p287 = pneg %p104
        %s288 = sand.u32 %s23, 1
        %s289 = scalar_lea.sflag [#allocation3], %s288
        %s290 = sand.u32 %s120, 1
        %s291 = smul.addr %s290, 256
        %s292 = scalar_lea.vmem [#allocation7], %s291
        %p293 = pneg %p133
        %p294 = pneg %p130
        %p295 = pneg %p159
        %p296 = pneg %p156
        %s297 = sand.u32 %s146, 1
        %s298 = scalar_lea.sflag [#allocation4], %s297
        %s299 = sand.u32 %s146, 1
        %s300 = smul.addr %s299, 256
        %s301 = scalar_lea.vmem [#allocation8], %s300
        %s302 = smul.u32 32, %s23
        %s303 = smul.u32 32, %s23
        %s304 = smul.u32 32, %s23
        %v305 = vld [vmem:[%s254] sm:$0xff]
        %v306 = vld [vmem:[%s254 + $0x8] sm:$0xff]
        %v307 = vld [vmem:[%s254 + $0x10] sm:$0xff]
        %v308 = vld [vmem:[%s254 + $0x18] sm:$0xff]
        %v309 = vld [vmem:[%s254 + $0x20] sm:$0xff]
        %v310 = vld [vmem:[%s254 + $0x28] sm:$0xff]
        %v311 = vld [vmem:[%s254 + $0x30] sm:$0xff]
        %v312 = vld [vmem:[%s254 + $0x38] sm:$0xff]
        %v313 = vld [vmem:[%s254 + $0x40] sm:$0xff]
        %v314 = vld [vmem:[%s254 + $0x48] sm:$0xff]
        %v315 = vld [vmem:[%s254 + $0x50] sm:$0xff]
        %v316 = vld [vmem:[%s254 + $0x58] sm:$0xff]
        %v317 = vld [vmem:[%s254 + $0x60] sm:$0xff]
        %v318 = vld [vmem:[%s254 + $0x68] sm:$0xff]
        %v319 = vld [vmem:[%s254 + $0x70] sm:$0xff]
        %v320 = vld [vmem:[%s254 + $0x78] sm:$0xff]
        %v321 = vld [vmem:[%s254 + $0x80] sm:$0xff]
        %v322 = vld [vmem:[%s254 + $0x88] sm:$0xff]
        %v323 = vld [vmem:[%s254 + $0x90] sm:$0xff]
        %v324 = vld [vmem:[%s254 + $0x98] sm:$0xff]
        %v325 = vld [vmem:[%s254 + $0xa0] sm:$0xff]
        %v326 = vld [vmem:[%s254 + $0xa8] sm:$0xff]
        %v327 = vld [vmem:[%s254 + $0xb0] sm:$0xff]
        %v328 = vld [vmem:[%s254 + $0xb8] sm:$0xff]
        %v329 = vld [vmem:[%s254 + $0xc0] sm:$0xff]
        %v330 = vld [vmem:[%s254 + $0xc8] sm:$0xff]
        %v331 = vld [vmem:[%s254 + $0xd0] sm:$0xff]
        %v332 = vld [vmem:[%s254 + $0xd8] sm:$0xff]
        %v333 = vld [vmem:[%s254 + $0xe0] sm:$0xff]
        %v334 = vld [vmem:[%s254 + $0xe8] sm:$0xff]
        %v335 = vld [vmem:[%s254 + $0xf0] sm:$0xff]
        %v336 = vld [vmem:[%s254 + $0xf8] sm:$0xff]
        %v337 = vld [vmem:[%s254 + $0x100] sm:$0xff]
        %v338 = vld [vmem:[%s254 + $0x108] sm:$0xff]
        %v339 = vld [vmem:[%s254 + $0x110] sm:$0xff]
        %v340 = vld [vmem:[%s254 + $0x118] sm:$0xff]
        %v341 = vld [vmem:[%s254 + $0x120] sm:$0xff]
        %v342 = vld [vmem:[%s254 + $0x128] sm:$0xff]
        %v343 = vld [vmem:[%s254 + $0x130] sm:$0xff]
        %v344 = vld [vmem:[%s254 + $0x138] sm:$0xff]
        %v345 = vld [vmem:[%s254 + $0x140] sm:$0xff]
        %v346 = vld [vmem:[%s254 + $0x148] sm:$0xff]
        %v347 = vld [vmem:[%s254 + $0x150] sm:$0xff]
        %v348 = vld [vmem:[%s254 + $0x158] sm:$0xff]
        %v349 = vld [vmem:[%s254 + $0x160] sm:$0xff]
        %v350 = vld [vmem:[%s254 + $0x168] sm:$0xff]
        %v351 = vld [vmem:[%s254 + $0x170] sm:$0xff]
        %v352 = vld [vmem:[%s254 + $0x178] sm:$0xff]
        %v353 = vld [vmem:[%s254 + $0x180] sm:$0xff]
        %v354 = vld [vmem:[%s254 + $0x188] sm:$0xff]
        %v355 = vld [vmem:[%s254 + $0x190] sm:$0xff]
        %v356 = vld [vmem:[%s254 + $0x198] sm:$0xff]
        %v357 = vld [vmem:[%s254 + $0x1a0] sm:$0xff]
        %v358 = vld [vmem:[%s254 + $0x1a8] sm:$0xff]
        %v359 = vld [vmem:[%s254 + $0x1b0] sm:$0xff]
        %v360 = vld [vmem:[%s254 + $0x1b8] sm:$0xff]
        %v361 = vld [vmem:[%s254 + $0x1c0] sm:$0xff]
        %v362 = vld [vmem:[%s254 + $0x1c8] sm:$0xff]
        %v363 = vld [vmem:[%s254 + $0x1d0] sm:$0xff]
        %v364 = vld [vmem:[%s254 + $0x1d8] sm:$0xff]
        %v365 = vld [vmem:[%s254 + $0x1e0] sm:$0xff]
        %v366 = vld [vmem:[%s254 + $0x1e8] sm:$0xff]
        %v367 = vld [vmem:[%s254 + $0x1f0] sm:$0xff]
        %v368 = vld [vmem:[%s254 + $0x1f8] sm:$0xff]
        %v369 = vld [vmem:[#allocation5] sm:$0xff]
        %v370 = vld [vmem:[#allocation5 + $0x8] sm:$0xff]
        %v371 = vld [vmem:[#allocation5 + $0x10] sm:$0xff]
        %v372 = vld [vmem:[#allocation5 + $0x18] sm:$0xff]
        %v373 = vld [vmem:[#allocation5 + $0x20] sm:$0xff]
        %v374 = vld [vmem:[#allocation5 + $0x28] sm:$0xff]
        %v375 = vld [vmem:[#allocation5 + $0x30] sm:$0xff]
        %v376 = vld [vmem:[#allocation5 + $0x38] sm:$0xff]
        %v377 = vld [vmem:[#allocation5 + $0x40] sm:$0xff]
        %v378 = vld [vmem:[#allocation5 + $0x48] sm:$0xff]
        %v379 = vld [vmem:[#allocation5 + $0x50] sm:$0xff]
        %v380 = vld [vmem:[#allocation5 + $0x58] sm:$0xff]
        %v381 = vld [vmem:[#allocation5 + $0x60] sm:$0xff]
        %v382 = vld [vmem:[#allocation5 + $0x68] sm:$0xff]
        %v383 = vld [vmem:[#allocation5 + $0x70] sm:$0xff]
        %v384 = vld [vmem:[#allocation5 + $0x78] sm:$0xff]
        %v385 = vld [vmem:[#allocation5 + $0x80] sm:$0xff]
        %v386 = vld [vmem:[#allocation5 + $0x88] sm:$0xff]
        %v387 = vld [vmem:[#allocation5 + $0x90] sm:$0xff]
        %v388 = vld [vmem:[#allocation5 + $0x98] sm:$0xff]
        %v389 = vld [vmem:[#allocation5 + $0xa0] sm:$0xff]
        %v390 = vld [vmem:[#allocation5 + $0xa8] sm:$0xff]
        %v391 = vld [vmem:[#allocation5 + $0xb0] sm:$0xff]
        %v392 = vld [vmem:[#allocation5 + $0xb8] sm:$0xff]
        %v393 = vld [vmem:[#allocation5 + $0xc0] sm:$0xff]
        %v394 = vld [vmem:[#allocation5 + $0xc8] sm:$0xff]
        %v395 = vld [vmem:[#allocation5 + $0xd0] sm:$0xff]
        %v396 = vld [vmem:[#allocation5 + $0xd8] sm:$0xff]
        %v397 = vld [vmem:[#allocation5 + $0xe0] sm:$0xff]
        %v398 = vld [vmem:[#allocation5 + $0xe8] sm:$0xff]
        %v399 = vld [vmem:[#allocation5 + $0xf0] sm:$0xff]
        %v400 = vld [vmem:[#allocation5 + $0xf8] sm:$0xff]
        %v401 = vld [vmem:[%s2] sm:$0x1]
        %v402 = vld [vmem:[%s3] sm:$0x1]
        %403 = vmatpush.msra.mxu0 %v384
        %404 = vmatpush.msra.mxu0 %v383
        %405 = vmatpush.msra.mxu0 %v382
        %406 = vmatpush.msra.mxu0 %v381
        %407 = vmatpush.msra.mxu0 %v380
        %408 = vmatpush.msra.mxu0 %v379
        %409 = vmatpush.msra.mxu0 %v378
        %410 = vmatpush.msra.mxu0 %v377
        %411 = vmatpush.msra.mxu0 %v376
        %412 = vmatpush.msra.mxu0 %v375
        %413 = vmatpush.msra.mxu0 %v374
        %414 = vmatpush.msra.mxu0 %v373
        %415 = vmatpush.msra.mxu0 %v372
        %416 = vmatpush.msra.mxu0 %v371
        %417 = vmatpush.msra.mxu0 %v370
        %418 = vmatpush.msra.mxu0 %v369
        %419 = vmatmul.f32.gmra.mxu0 %v305
        %v420 = vpop.f32.mrf.mxu0
        %v421 = vadd.f32 0.0, %v420
        %422 = vmatmul.f32.gmra.mxu0 %v307
        %v423 = vpop.f32.mrf.mxu0
        %v424 = vadd.f32 0.0, %v423
        %425 = vmatmul.f32.gmra.mxu0 %v309
        %v426 = vpop.f32.mrf.mxu0
        %v427 = vadd.f32 0.0, %v426
        %428 = vmatmul.f32.gmra.mxu0 %v311
        %v429 = vpop.f32.mrf.mxu0
        %v430 = vadd.f32 0.0, %v429
        %431 = vmatmul.f32.gmra.mxu0 %v313
        %v432 = vpop.f32.mrf.mxu0
        %v433 = vadd.f32 0.0, %v432
        %434 = vmatmul.f32.gmra.mxu0 %v315
        %v435 = vpop.f32.mrf.mxu0
        %v436 = vadd.f32 0.0, %v435
        %437 = vmatmul.f32.gmra.mxu0 %v317
        %v438 = vpop.f32.mrf.mxu0
        %v439 = vadd.f32 0.0, %v438
        %440 = vmatmul.f32.gmra.mxu0 %v319
        %v441 = vpop.f32.mrf.mxu0
        %v442 = vadd.f32 0.0, %v441
        %443 = vmatmul.f32.gmra.mxu0 %v321
        %v444 = vpop.f32.mrf.mxu0
        %v445 = vadd.f32 0.0, %v444
        %446 = vmatmul.f32.gmra.mxu0 %v323
        %v447 = vpop.f32.mrf.mxu0
        %v448 = vadd.f32 0.0, %v447
        %449 = vmatmul.f32.gmra.mxu0 %v325
        %v450 = vpop.f32.mrf.mxu0
        %v451 = vadd.f32 0.0, %v450
        %452 = vmatmul.f32.gmra.mxu0 %v327
        %v453 = vpop.f32.mrf.mxu0
        %v454 = vadd.f32 0.0, %v453
        %455 = vmatmul.f32.gmra.mxu0 %v329
        %v456 = vpop.f32.mrf.mxu0
        %v457 = vadd.f32 0.0, %v456
        %458 = vmatmul.f32.gmra.mxu0 %v331
        %v459 = vpop.f32.mrf.mxu0
        %v460 = vadd.f32 0.0, %v459
        %461 = vmatmul.f32.gmra.mxu0 %v333
        %v462 = vpop.f32.mrf.mxu0
        %v463 = vadd.f32 0.0, %v462
        %464 = vmatmul.f32.gmra.mxu0 %v335
        %v465 = vpop.f32.mrf.mxu0
        %v466 = vadd.f32 0.0, %v465
        %467 = vmatmul.f32.gmra.mxu0 %v337
        %v468 = vpop.f32.mrf.mxu0
        %v469 = vadd.f32 0.0, %v468
        %470 = vmatmul.f32.gmra.mxu0 %v339
        %v471 = vpop.f32.mrf.mxu0
        %v472 = vadd.f32 0.0, %v471
        %473 = vmatmul.f32.gmra.mxu0 %v341
        %v474 = vpop.f32.mrf.mxu0
        %v475 = vadd.f32 0.0, %v474
        %476 = vmatmul.f32.gmra.mxu0 %v343
        %v477 = vpop.f32.mrf.mxu0
        %v478 = vadd.f32 0.0, %v477
        %479 = vmatmul.f32.gmra.mxu0 %v345
        %v480 = vpop.f32.mrf.mxu0
        %v481 = vadd.f32 0.0, %v480
        %482 = vmatmul.f32.gmra.mxu0 %v347
        %v483 = vpop.f32.mrf.mxu0
        %v484 = vadd.f32 0.0, %v483
        %485 = vmatmul.f32.gmra.mxu0 %v349
        %v486 = vpop.f32.mrf.mxu0
        %v487 = vadd.f32 0.0, %v486
        %488 = vmatmul.f32.gmra.mxu0 %v351
        %v489 = vpop.f32.mrf.mxu0
        %v490 = vadd.f32 0.0, %v489
        %491 = vmatmul.f32.gmra.mxu0 %v353
        %v492 = vpop.f32.mrf.mxu0
        %v493 = vadd.f32 0.0, %v492
        %494 = vmatmul.f32.gmra.mxu0 %v355
        %v495 = vpop.f32.mrf.mxu0
        %v496 = vadd.f32 0.0, %v495
        %497 = vmatmul.f32.gmra.mxu0 %v357
        %v498 = vpop.f32.mrf.mxu0
        %v499 = vadd.f32 0.0, %v498
        %500 = vmatmul.f32.gmra.mxu0 %v359
        %v501 = vpop.f32.mrf.mxu0
        %v502 = vadd.f32 0.0, %v501
        %503 = vmatmul.f32.gmra.mxu0 %v361
        %v504 = vpop.f32.mrf.mxu0
        %v505 = vadd.f32 0.0, %v504
        %506 = vmatmul.f32.gmra.mxu0 %v363
        %v507 = vpop.f32.mrf.mxu0
        %v508 = vadd.f32 0.0, %v507
        %509 = vmatmul.f32.gmra.mxu0 %v365
        %v510 = vpop.f32.mrf.mxu0
        %v511 = vadd.f32 0.0, %v510
        %512 = vmatmul.f32.gmra.mxu0 %v367
        %v513 = vpop.f32.mrf.mxu0
        %v514 = vadd.f32 0.0, %v513
        %515 = vdwg.mxu0
        %516 = vmatpush.msra.mxu0 %v400
        %517 = vmatpush.msra.mxu0 %v399
        %518 = vmatpush.msra.mxu0 %v398
        %519 = vmatpush.msra.mxu0 %v397
        %520 = vmatpush.msra.mxu0 %v396
        %521 = vmatpush.msra.mxu0 %v395
        %522 = vmatpush.msra.mxu0 %v394
        %523 = vmatpush.msra.mxu0 %v393
        %524 = vmatpush.msra.mxu0 %v392
        %525 = vmatpush.msra.mxu0 %v391
        %526 = vmatpush.msra.mxu0 %v390
        %527 = vmatpush.msra.mxu0 %v389
        %528 = vmatpush.msra.mxu0 %v388
        %529 = vmatpush.msra.mxu0 %v387
        %530 = vmatpush.msra.mxu0 %v386
        %531 = vmatpush.msra.mxu0 %v385
        %532 = vmatmul.f32.gmra.mxu0 %v306
        %v533 = vpop.f32.mrf.mxu0
        %v534 = vadd.f32 %v421, %v533
        %535 = vmatmul.f32.gmra.mxu0 %v308
        %v536 = vpop.f32.mrf.mxu0
        %v537 = vadd.f32 %v424, %v536
        %538 = vmatmul.f32.gmra.mxu0 %v310
        %v539 = vpop.f32.mrf.mxu0
        %v540 = vadd.f32 %v427, %v539
        %541 = vmatmul.f32.gmra.mxu0 %v312
        %v542 = vpop.f32.mrf.mxu0
        %v543 = vadd.f32 %v430, %v542
        %544 = vmatmul.f32.gmra.mxu0 %v314
        %v545 = vpop.f32.mrf.mxu0
        %v546 = vadd.f32 %v433, %v545
        %547 = vmatmul.f32.gmra.mxu0 %v316
        %v548 = vpop.f32.mrf.mxu0
        %v549 = vadd.f32 %v436, %v548
        %550 = vmatmul.f32.gmra.mxu0 %v318
        %v551 = vpop.f32.mrf.mxu0
        %v552 = vadd.f32 %v439, %v551
        %553 = vmatmul.f32.gmra.mxu0 %v320
        %v554 = vpop.f32.mrf.mxu0
        %v555 = vadd.f32 %v442, %v554
        %556 = vmatmul.f32.gmra.mxu0 %v322
        %v557 = vpop.f32.mrf.mxu0
        %v558 = vadd.f32 %v445, %v557
        %559 = vmatmul.f32.gmra.mxu0 %v324
        %v560 = vpop.f32.mrf.mxu0
        %v561 = vadd.f32 %v448, %v560
        %562 = vmatmul.f32.gmra.mxu0 %v326
        %v563 = vpop.f32.mrf.mxu0
        %v564 = vadd.f32 %v451, %v563
        %565 = vmatmul.f32.gmra.mxu0 %v328
        %v566 = vpop.f32.mrf.mxu0
        %v567 = vadd.f32 %v454, %v566
        %568 = vmatmul.f32.gmra.mxu0 %v330
        %v569 = vpop.f32.mrf.mxu0
        %v570 = vadd.f32 %v457, %v569
        %571 = vmatmul.f32.gmra.mxu0 %v332
        %v572 = vpop.f32.mrf.mxu0
        %v573 = vadd.f32 %v460, %v572
        %574 = vmatmul.f32.gmra.mxu0 %v334
        %v575 = vpop.f32.mrf.mxu0
        %v576 = vadd.f32 %v463, %v575
        %577 = vmatmul.f32.gmra.mxu0 %v336
        %v578 = vpop.f32.mrf.mxu0
        %v579 = vadd.f32 %v466, %v578
        %580 = vmatmul.f32.gmra.mxu0 %v338
        %v581 = vpop.f32.mrf.mxu0
        %v582 = vadd.f32 %v469, %v581
        %583 = vmatmul.f32.gmra.mxu0 %v340
        %v584 = vpop.f32.mrf.mxu0
        %v585 = vadd.f32 %v472, %v584
        %586 = vmatmul.f32.gmra.mxu0 %v342
        %v587 = vpop.f32.mrf.mxu0
        %v588 = vadd.f32 %v475, %v587
        %589 = vmatmul.f32.gmra.mxu0 %v344
        %v590 = vpop.f32.mrf.mxu0
        %v591 = vadd.f32 %v478, %v590
        %592 = vmatmul.f32.gmra.mxu0 %v346
        %v593 = vpop.f32.mrf.mxu0
        %v594 = vadd.f32 %v481, %v593
        %595 = vmatmul.f32.gmra.mxu0 %v348
        %v596 = vpop.f32.mrf.mxu0
        %v597 = vadd.f32 %v484, %v596
        %598 = vmatmul.f32.gmra.mxu0 %v350
        %v599 = vpop.f32.mrf.mxu0
        %v600 = vadd.f32 %v487, %v599
        %601 = vmatmul.f32.gmra.mxu0 %v352
        %v602 = vpop.f32.mrf.mxu0
        %v603 = vadd.f32 %v490, %v602
        %604 = vmatmul.f32.gmra.mxu0 %v354
        %v605 = vpop.f32.mrf.mxu0
        %v606 = vadd.f32 %v493, %v605
        %607 = vmatmul.f32.gmra.mxu0 %v356
        %v608 = vpop.f32.mrf.mxu0
        %v609 = vadd.f32 %v496, %v608
        %610 = vmatmul.f32.gmra.mxu0 %v358
        %v611 = vpop.f32.mrf.mxu0
        %v612 = vadd.f32 %v499, %v611
        %613 = vmatmul.f32.gmra.mxu0 %v360
        %v614 = vpop.f32.mrf.mxu0
        %v615 = vadd.f32 %v502, %v614
        %616 = vmatmul.f32.gmra.mxu0 %v362
        %v617 = vpop.f32.mrf.mxu0
        %v618 = vadd.f32 %v505, %v617
        %619 = vmatmul.f32.gmra.mxu0 %v364
        %v620 = vpop.f32.mrf.mxu0
        %v621 = vadd.f32 %v508, %v620
        %622 = vmatmul.f32.gmra.mxu0 %v366
        %v623 = vpop.f32.mrf.mxu0
        %v624 = vadd.f32 %v511, %v623
        %625 = vmatmul.f32.gmra.mxu0 %v368
        %v626 = vpop.f32.mrf.mxu0
        %v627 = vadd.f32 %v514, %v626
        %628 = vdwg.mxu0
        %vm629 = vcmp.ge.f32.partialorder %v534, 0.0
        %vm630 = vcmp.ge.f32.partialorder %v537, 0.0
        %vm631 = vcmp.ge.f32.partialorder %v540, 0.0
        %vm632 = vcmp.ge.f32.partialorder %v543, 0.0
        %vm633 = vcmp.ge.f32.partialorder %v546, 0.0
        %vm634 = vcmp.ge.f32.partialorder %v549, 0.0
        %vm635 = vcmp.ge.f32.partialorder %v552, 0.0
        %vm636 = vcmp.ge.f32.partialorder %v555, 0.0
        %vm637 = vcmp.ge.f32.partialorder %v558, 0.0
        %vm638 = vcmp.ge.f32.partialorder %v561, 0.0
        %vm639 = vcmp.ge.f32.partialorder %v564, 0.0
        %vm640 = vcmp.ge.f32.partialorder %v567, 0.0
        %vm641 = vcmp.ge.f32.partialorder %v570, 0.0
        %vm642 = vcmp.ge.f32.partialorder %v573, 0.0
        %vm643 = vcmp.ge.f32.partialorder %v576, 0.0
        %vm644 = vcmp.ge.f32.partialorder %v579, 0.0
        %vm645 = vcmp.ge.f32.partialorder %v582, 0.0
        %vm646 = vcmp.ge.f32.partialorder %v585, 0.0
        %vm647 = vcmp.ge.f32.partialorder %v588, 0.0
        %vm648 = vcmp.ge.f32.partialorder %v591, 0.0
        %vm649 = vcmp.ge.f32.partialorder %v594, 0.0
        %vm650 = vcmp.ge.f32.partialorder %v597, 0.0
        %vm651 = vcmp.ge.f32.partialorder %v600, 0.0
        %vm652 = vcmp.ge.f32.partialorder %v603, 0.0
        %vm653 = vcmp.ge.f32.partialorder %v606, 0.0
        %vm654 = vcmp.ge.f32.partialorder %v609, 0.0
        %vm655 = vcmp.ge.f32.partialorder %v612, 0.0
        %vm656 = vcmp.ge.f32.partialorder %v615, 0.0
        %vm657 = vcmp.ge.f32.partialorder %v618, 0.0
        %vm658 = vcmp.ge.f32.partialorder %v621, 0.0
        %vm659 = vcmp.ge.f32.partialorder %v624, 0.0
        %vm660 = vcmp.ge.f32.partialorder %v627, 0.0
        %v661 = vmul.f32 %v534, 0.01
        %v662 = vmul.f32 %v537, 0.01
        %v663 = vmul.f32 %v540, 0.01
        %v664 = vmul.f32 %v543, 0.01
        %v665 = vmul.f32 %v546, 0.01
        %v666 = vmul.f32 %v549, 0.01
        %v667 = vmul.f32 %v552, 0.01
        %v668 = vmul.f32 %v555, 0.01
        %v669 = vmul.f32 %v558, 0.01
        %v670 = vmul.f32 %v561, 0.01
        %v671 = vmul.f32 %v564, 0.01
        %v672 = vmul.f32 %v567, 0.01
        %v673 = vmul.f32 %v570, 0.01
        %v674 = vmul.f32 %v573, 0.01
        %v675 = vmul.f32 %v576, 0.01
        %v676 = vmul.f32 %v579, 0.01
        %v677 = vmul.f32 %v582, 0.01
        %v678 = vmul.f32 %v585, 0.01
        %v679 = vmul.f32 %v588, 0.01
        %v680 = vmul.f32 %v591, 0.01
        %v681 = vmul.f32 %v594, 0.01
        %v682 = vmul.f32 %v597, 0.01
        %v683 = vmul.f32 %v600, 0.01
        %v684 = vmul.f32 %v603, 0.01
        %v685 = vmul.f32 %v606, 0.01
        %v686 = vmul.f32 %v609, 0.01
        %v687 = vmul.f32 %v612, 0.01
        %v688 = vmul.f32 %v615, 0.01
        %v689 = vmul.f32 %v618, 0.01
        %v690 = vmul.f32 %v621, 0.01
        %v691 = vmul.f32 %v624, 0.01
        %v692 = vmul.f32 %v627, 0.01
        %v693 = vsel %vm629, %v534, %v661
        %v694 = vsel %vm630, %v537, %v662
        %v695 = vsel %vm631, %v540, %v663
        %v696 = vsel %vm632, %v543, %v664
        %v697 = vsel %vm633, %v546, %v665
        %v698 = vsel %vm634, %v549, %v666
        %v699 = vsel %vm635, %v552, %v667
        %v700 = vsel %vm636, %v555, %v668
        %v701 = vsel %vm637, %v558, %v669
        %v702 = vsel %vm638, %v561, %v670
        %v703 = vsel %vm639, %v564, %v671
        %v704 = vsel %vm640, %v567, %v672
        %v705 = vsel %vm641, %v570, %v673
        %v706 = vsel %vm642, %v573, %v674
        %v707 = vsel %vm643, %v576, %v675
        %v708 = vsel %vm644, %v579, %v676
        %v709 = vsel %vm645, %v582, %v677
        %v710 = vsel %vm646, %v585, %v678
        %v711 = vsel %vm647, %v588, %v679
        %v712 = vsel %vm648, %v591, %v680
        %v713 = vsel %vm649, %v594, %v681
        %v714 = vsel %vm650, %v597, %v682
        %v715 = vsel %vm651, %v600, %v683
        %v716 = vsel %vm652, %v603, %v684
        %v717 = vsel %vm653, %v606, %v685
        %v718 = vsel %vm654, %v609, %v686
        %v719 = vsel %vm655, %v612, %v687
        %v720 = vsel %vm656, %v615, %v688
        %v721 = vsel %vm657, %v618, %v689
        %v722 = vsel %vm658, %v621, %v690
        %v723 = vsel %vm659, %v624, %v691
        %v724 = vsel %vm660, %v627, %v692
        %v726 = vperm.slane %v401, 0
        %v728 = vmul.f32 %v693, %v726
        %v729 = vmul.f32 %v694, %v726
        %v730 = vmul.f32 %v695, %v726
        %v731 = vmul.f32 %v696, %v726
        %v732 = vmul.f32 %v697, %v726
        %v733 = vmul.f32 %v698, %v726
        %v734 = vmul.f32 %v699, %v726
        %v735 = vmul.f32 %v700, %v726
        %v736 = vmul.f32 %v701, %v726
        %v737 = vmul.f32 %v702, %v726
        %v738 = vmul.f32 %v703, %v726
        %v739 = vmul.f32 %v704, %v726
        %v740 = vmul.f32 %v705, %v726
        %v741 = vmul.f32 %v706, %v726
        %v742 = vmul.f32 %v707, %v726
        %v743 = vmul.f32 %v708, %v726
        %v744 = vmul.f32 %v709, %v726
        %v745 = vmul.f32 %v710, %v726
        %v746 = vmul.f32 %v711, %v726
        %v747 = vmul.f32 %v712, %v726
        %v748 = vmul.f32 %v713, %v726
        %v749 = vmul.f32 %v714, %v726
        %v750 = vmul.f32 %v715, %v726
        %v751 = vmul.f32 %v716, %v726
        %v752 = vmul.f32 %v717, %v726
        %v753 = vmul.f32 %v718, %v726
        %v754 = vmul.f32 %v719, %v726
        %v755 = vmul.f32 %v720, %v726
        %v756 = vmul.f32 %v721, %v726
        %v757 = vmul.f32 %v722, %v726
        %v758 = vmul.f32 %v723, %v726
        %v759 = vmul.f32 %v724, %v726
        %v761 = vperm.slane %v402, 0
        %v763 = vadd.f32 %v728, %v761
        %v764 = vadd.f32 %v729, %v761
        %v765 = vadd.f32 %v730, %v761
        %v766 = vadd.f32 %v731, %v761
        %v767 = vadd.f32 %v732, %v761
        %v768 = vadd.f32 %v733, %v761
        %v769 = vadd.f32 %v734, %v761
        %v770 = vadd.f32 %v735, %v761
        %v771 = vadd.f32 %v736, %v761
        %v772 = vadd.f32 %v737, %v761
        %v773 = vadd.f32 %v738, %v761
        %v774 = vadd.f32 %v739, %v761
        %v775 = vadd.f32 %v740, %v761
        %v776 = vadd.f32 %v741, %v761
        %v777 = vadd.f32 %v742, %v761
        %v778 = vadd.f32 %v743, %v761
        %v779 = vadd.f32 %v744, %v761
        %v780 = vadd.f32 %v745, %v761
        %v781 = vadd.f32 %v746, %v761
        %v782 = vadd.f32 %v747, %v761
        %v783 = vadd.f32 %v748, %v761
        %v784 = vadd.f32 %v749, %v761
        %v785 = vadd.f32 %v750, %v761
        %v786 = vadd.f32 %v751, %v761
        %v787 = vadd.f32 %v752, %v761
        %v788 = vadd.f32 %v753, %v761
        %v789 = vadd.f32 %v754, %v761
        %v790 = vadd.f32 %v755, %v761
        %v791 = vadd.f32 %v756, %v761
        %v792 = vadd.f32 %v757, %v761
        %v793 = vadd.f32 %v758, %v761
        %v794 = vadd.f32 %v759, %v761
        %v795 = vld [vmem:[%s269] sm:$0xff]
        %v796 = vld [vmem:[%s269 + $0x8] sm:$0xff]
        %v797 = vld [vmem:[%s269 + $0x10] sm:$0xff]
        %v798 = vld [vmem:[%s269 + $0x18] sm:$0xff]
        %v799 = vld [vmem:[%s269 + $0x20] sm:$0xff]
        %v800 = vld [vmem:[%s269 + $0x28] sm:$0xff]
        %v801 = vld [vmem:[%s269 + $0x30] sm:$0xff]
        %v802 = vld [vmem:[%s269 + $0x38] sm:$0xff]
        %v803 = vld [vmem:[%s269 + $0x40] sm:$0xff]
        %v804 = vld [vmem:[%s269 + $0x48] sm:$0xff]
        %v805 = vld [vmem:[%s269 + $0x50] sm:$0xff]
        %v806 = vld [vmem:[%s269 + $0x58] sm:$0xff]
        %v807 = vld [vmem:[%s269 + $0x60] sm:$0xff]
        %v808 = vld [vmem:[%s269 + $0x68] sm:$0xff]
        %v809 = vld [vmem:[%s269 + $0x70] sm:$0xff]
        %v810 = vld [vmem:[%s269 + $0x78] sm:$0xff]
        %v811 = vld [vmem:[%s269 + $0x80] sm:$0xff]
        %v812 = vld [vmem:[%s269 + $0x88] sm:$0xff]
        %v813 = vld [vmem:[%s269 + $0x90] sm:$0xff]
        %v814 = vld [vmem:[%s269 + $0x98] sm:$0xff]
        %v815 = vld [vmem:[%s269 + $0xa0] sm:$0xff]
        %v816 = vld [vmem:[%s269 + $0xa8] sm:$0xff]
        %v817 = vld [vmem:[%s269 + $0xb0] sm:$0xff]
        %v818 = vld [vmem:[%s269 + $0xb8] sm:$0xff]
        %v819 = vld [vmem:[%s269 + $0xc0] sm:$0xff]
        %v820 = vld [vmem:[%s269 + $0xc8] sm:$0xff]
        %v821 = vld [vmem:[%s269 + $0xd0] sm:$0xff]
        %v822 = vld [vmem:[%s269 + $0xd8] sm:$0xff]
        %v823 = vld [vmem:[%s269 + $0xe0] sm:$0xff]
        %v824 = vld [vmem:[%s269 + $0xe8] sm:$0xff]
        %v825 = vld [vmem:[%s269 + $0xf0] sm:$0xff]
        %v826 = vld [vmem:[%s269 + $0xf8] sm:$0xff]
        %v827 = vadd.f32 %v763, %v795
        %v828 = vadd.f32 %v764, %v796
        %v829 = vadd.f32 %v765, %v797
        %v830 = vadd.f32 %v766, %v798
        %v831 = vadd.f32 %v767, %v799
        %v832 = vadd.f32 %v768, %v800
        %v833 = vadd.f32 %v769, %v801
        %v834 = vadd.f32 %v770, %v802
        %v835 = vadd.f32 %v771, %v803
        %v836 = vadd.f32 %v772, %v804
        %v837 = vadd.f32 %v773, %v805
        %v838 = vadd.f32 %v774, %v806
        %v839 = vadd.f32 %v775, %v807
        %v840 = vadd.f32 %v776, %v808
        %v841 = vadd.f32 %v777, %v809
        %v842 = vadd.f32 %v778, %v810
        %v843 = vadd.f32 %v779, %v811
        %v844 = vadd.f32 %v780, %v812
        %v845 = vadd.f32 %v781, %v813
        %v846 = vadd.f32 %v782, %v814
        %v847 = vadd.f32 %v783, %v815
        %v848 = vadd.f32 %v784, %v816
        %v849 = vadd.f32 %v785, %v817
        %v850 = vadd.f32 %v786, %v818
        %v851 = vadd.f32 %v787, %v819
        %v852 = vadd.f32 %v788, %v820
        %v853 = vadd.f32 %v789, %v821
        %v854 = vadd.f32 %v790, %v822
        %v855 = vadd.f32 %v791, %v823
        %v856 = vadd.f32 %v792, %v824
        %v857 = vadd.f32 %v793, %v825
        %v858 = vadd.f32 %v794, %v826
        %859 = vst [vmem:[%s301] sm:$0xff] %v827
        %860 = vst [vmem:[%s301 + $0x8] sm:$0xff] %v828
        %861 = vst [vmem:[%s301 + $0x10] sm:$0xff] %v829
        %862 = vst [vmem:[%s301 + $0x18] sm:$0xff] %v830
        %863 = vst [vmem:[%s301 + $0x20] sm:$0xff] %v831
        %864 = vst [vmem:[%s301 + $0x28] sm:$0xff] %v832
        %865 = vst [vmem:[%s301 + $0x30] sm:$0xff] %v833
        %866 = vst [vmem:[%s301 + $0x38] sm:$0xff] %v834
        %867 = vst [vmem:[%s301 + $0x40] sm:$0xff] %v835
        %868 = vst [vmem:[%s301 + $0x48] sm:$0xff] %v836
        %869 = vst [vmem:[%s301 + $0x50] sm:$0xff] %v837
        %870 = vst [vmem:[%s301 + $0x58] sm:$0xff] %v838
        %871 = vst [vmem:[%s301 + $0x60] sm:$0xff] %v839
        %872 = vst [vmem:[%s301 + $0x68] sm:$0xff] %v840
        %873 = vst [vmem:[%s301 + $0x70] sm:$0xff] %v841
        %874 = vst [vmem:[%s301 + $0x78] sm:$0xff] %v842
        %875 = vst [vmem:[%s301 + $0x80] sm:$0xff] %v843
        %876 = vst [vmem:[%s301 + $0x88] sm:$0xff] %v844
        %877 = vst [vmem:[%s301 + $0x90] sm:$0xff] %v845
        %878 = vst [vmem:[%s301 + $0x98] sm:$0xff] %v846
        %879 = vst [vmem:[%s301 + $0xa0] sm:$0xff] %v847
        %880 = vst [vmem:[%s301 + $0xa8] sm:$0xff] %v848
        %881 = vst [vmem:[%s301 + $0xb0] sm:$0xff] %v849
        %882 = vst [vmem:[%s301 + $0xb8] sm:$0xff] %v850
        %883 = vst [vmem:[%s301 + $0xc0] sm:$0xff] %v851
        %884 = vst [vmem:[%s301 + $0xc8] sm:$0xff] %v852
        %885 = vst [vmem:[%s301 + $0xd0] sm:$0xff] %v853
        %886 = vst [vmem:[%s301 + $0xd8] sm:$0xff] %v854
        %887 = vst [vmem:[%s301 + $0xe0] sm:$0xff] %v855
        %888 = vst [vmem:[%s301 + $0xe8] sm:$0xff] %v856
        %889 = vst [vmem:[%s301 + $0xf0] sm:$0xff] %v857
        %890 = vst [vmem:[%s301 + $0xf8] sm:$0xff] %v858
        %s891 = sand.u32 %s146, 1
        %s892 = scalar_lea.sflag [#allocation4], %s891
        %s893 = sand.u32 %s146, 1
        %s894 = smul.addr %s893, 256
        %s895 = scalar_lea.vmem [#allocation8], %s894
        // Predicated region
        $region53: #{tpu_custom_call.1} parent=39 // pred_check
          %p896 = pneg %p156
        $region54: #{tpu_custom_call.1} parent=39 // pred_check_branch
          %898 = sbr.rel (%p896) target = $region56
        $region55: #{tpu_custom_call.1} parent=39 // pred_region
          %s899 = smul.u32 32, %s23
          %901 = vsyncadd %s892, 0
          %s902 = smul.addr %s899, 8
          %s903 = scalar_lea.hbm %s5, %s902
          %s904 = sshll.u32 %s895, 4
          %s905 = int_to_ptr.vmem [resolvable:$true] %s904
          %s906 = sshll.u32 %s903, 4
          %s907 = int_to_ptr.hbm [resolvable:$true] %s906
          %912 = dma.vmem_to_hbm [thread:$0]  %s905, 4096, %s907, %s892, 128, 128, 8
        $region56: #{tpu_custom_call.1} parent=39 // pred_fallthru
          _
      $region40: #{tpu_custom_call.1} parent=5 // pred_fallthru
        _
      %p913 = scmp.le.s32.totalorder 2, %s18
      // Predicated region
      $region57: #{tpu_custom_call.1} parent=5 // pred_check
        %p914 = pneg %p913
      $region58: #{tpu_custom_call.1} parent=5 // pred_check_branch
        %916 = sbr.rel (%p914) target = $region60
      $region59: #{tpu_custom_call.1} parent=5 // pred_region
        %s917 = ssub.s32 %s18, 2
        // Predicated region
        $region61: #{tpu_custom_call.1} parent=59 // pred_check
          %p918 = pneg %p162
        $region62: #{tpu_custom_call.1} parent=59 // pred_check_branch
          %920 = sbr.rel (%p918) target = $region64
        $region63: #{tpu_custom_call.1} parent=59 // pred_region
          %s921 = sand.u32 %s147, 1
          %s922 = scalar_lea.sflag [#allocation4], %s921
          %s923 = sand.u32 %s147, 1
          %s924 = smul.addr %s923, 256
          %s925 = scalar_lea.vmem [#allocation8], %s924
          %927 = dma.done %s922, 4096
        $region64: #{tpu_custom_call.1} parent=59 // pred_fallthru
          _
      $region60: #{tpu_custom_call.1} parent=5 // pred_fallthru
        _
    $region6: #{tpu_custom_call.1} parent=1 // loop_footer
      %s22 = sadd.s32 1, %s18
    $region7: #{tpu_custom_call.1} parent=1 // loop_footer_branch
      %17 = sbr.rel target = $region3
    $region8: #{tpu_custom_call.1} parent=1 // loop_exit
      _
    %928 = vsyncpa [#allocation3], 1
    %s929 = scalar_lea.sflag [#allocation3], 1
    %930 = vsyncpa %s929, 1
    %931 = vsyncpa [#allocation6], 1
    %932 = vsyncpa [#allocation4], 1
    %s933 = scalar_lea.sflag [#allocation4], 1
    %934 = vsyncpa %s933, 1

</llo_original>
